<compile_context>
chip_gen: v7x
topology: tpu7x:2x2x1
jax: 0.10.0
libtpu: 0.0.40
codegen_flags: <defaults>
</compile_context>

<pallas_src>
import jax
import jax.numpy as jnp
from jax import lax
from jax.experimental import pallas as pl
from jax.experimental.pallas import tpu as pltpu


def _round_up(x, m):
    return ((x + m - 1) // m) * m


def _make_kernel(n_hops):
    def kernel(*refs):
        hop_refs = refs[:n_hops]
        w1s_ref, b1_ref, alpha_ref, wpt_ref, bp_ref, out_ref = refs[n_hops:]

        # First layer: h = concat_r( x_r @ W_r ) + b, built as a sum of dots
        # against zero-embedded weight slabs (disjoint output columns), which
        # avoids any in-kernel concatenate / scatter.
        h = jnp.dot(hop_refs[0][...].astype(jnp.bfloat16), w1s_ref[0],
                    preferred_element_type=jnp.float32)
        for r in range(1, n_hops):
            h = h + jnp.dot(hop_refs[r][...].astype(jnp.bfloat16), w1s_ref[r],
                            preferred_element_type=jnp.float32)
        h = h + b1_ref[...]                               # (tn, Kh)
        h = jnp.where(h >= 0, h, alpha_ref[...] * h)      # per-hop PReLU

        # Projection, transposed: (O, Kh) . (tn, Kh)^T -> (O, tn).
        y = lax.dot_general(
            wpt_ref[...], h.astype(jnp.bfloat16),
            dimension_numbers=(((1,), (1,)), ((), ())),
            preferred_element_type=jnp.float32)
        out_ref[...] = y + bp_ref[...]
    return kernel


def qmodel_forward(feats, w1, b1, alpha, wp, bp, *, tile_n=2048):
    """
    feats : list of (R+1) arrays, each (N, F)  -- per-hop node features (f32)
    w1    : (R+1, F, H)   per-hop Linear weights, pre-transposed (h = x @ w1[r])
    b1    : (R+1, H)      per-hop Linear biases
    alpha : (R+1,)        per-hop PReLU slope (nn.PReLU() default: one scalar each)
    wp    : (H*(R+1), O)  projection weight, pre-transposed
    bp    : (O,)          projection bias
    returns (N, O) float32
    """
    Rp1 = len(feats)
    N, F = feats[0].shape
    H = w1.shape[2]
    O = wp.shape[1]
    Kh = Rp1 * H

    compute_dtype = jnp.bfloat16

    # Zero-embedded per-hop weight slabs: x_r @ slab_r populates only hop r's
    # hidden columns, so summing over hops yields the concatenated hidden.
    w1_slabs = jnp.zeros((Rp1, F, Kh), jnp.float32)
    for r in range(Rp1):
        w1_slabs = w1_slabs.at[r, :, r * H:(r + 1) * H].set(w1[r])
    w1_slabs = w1_slabs.astype(compute_dtype)
    b1_vec = b1.reshape(1, Kh).astype(jnp.float32)
    alpha_vec = jnp.repeat(alpha.reshape(Rp1), H).reshape(1, Kh).astype(jnp.float32)
    wp_t = wp.T.astype(compute_dtype)                   # (O, Kh)
    bp_col = bp.reshape(O, 1).astype(jnp.float32)       # (O, 1)

    # ---- Node-dimension tiling ----
    tile_n = max(_round_up(tile_n, 128), 128)
    if N <= 256:
        # Single tile; blocks equal the full (padded) array extents.
        tn = max(_round_up(N, 16), 16)
    else:
        # Lane-aligned tiles (output lane dim = tn); aim for >= 2 tiles so
        # both v7x TensorCores get work ("parallel" grid axis).
        tn = min(tile_n, _round_up((N + 1) // 2, 128))
    n_pad = _round_up(N, tn)
    if n_pad != N:
        feats = [jnp.pad(f, ((0, n_pad - N), (0, 0))) for f in feats]

    grid = (n_pad // tn,)
    hop_spec = pl.BlockSpec((tn, F), lambda i: (i, 0))

    def const(shape):
        return pl.BlockSpec(shape, lambda i, _s=len(shape): (0,) * _s)

    out_t = pl.pallas_call(
        _make_kernel(Rp1),
        out_shape=jax.ShapeDtypeStruct((O, n_pad), jnp.float32),
        grid_spec=pltpu.PrefetchScalarGridSpec(
            num_scalar_prefetch=0,
            grid=grid,
            in_specs=[hop_spec] * Rp1 + [
                const((Rp1, F, Kh)),   # W1 slabs  (VMEM-resident)
                const((1, Kh)),        # b1        (resident)
                const((1, Kh)),        # alpha     (resident)
                const((O, Kh)),        # Wp^T      (resident)
                const((O, 1)),         # bp        (resident)
            ],
            out_specs=pl.BlockSpec((O, tn), lambda i: (0, i)),
        ),
        compiler_params=pltpu.CompilerParams(
            dimension_semantics=("parallel",)),
    )(*feats, w1_slabs, b1_vec, alpha_vec, wp_t, bp_col)

    # Tiny (O, N) slab -> (N, O); negligible traffic compared to feats.
    return out_t[:, :N].T


def reference_forward(feats, w1, b1, alpha, wp, bp):
    hs = []
    for r, feat in enumerate(feats):
        h = feat @ w1[r] + b1[r][None, :]
        h = jnp.where(h >= 0, h, alpha[r] * h)
        hs.append(h)
    cat = jnp.concatenate(hs, axis=-1)
    return cat @ wp + bp[None, :]


if __name__ == "__main__":
    # Small, module-consistent shapes.
    R = 3            # => R+1 = 4 hop features
    N = 16           # number of nodes (batch)
    in_feats = 32
    hidden = 32
    out_feats = 8

    key = jax.random.PRNGKey(0)
    k_feat, k_w1, k_b1, k_wp, k_bp = jax.random.split(key, 5)

    feats_stack = jax.random.normal(k_feat, (R + 1, N, in_feats), dtype=jnp.float32)
    feats = [feats_stack[r] for r in range(R + 1)]

    # Per-hop Linear(in_feats, hidden): weight (hidden, in_feats) -> stored transposed.
    w1 = 0.1 * jax.random.normal(k_w1, (R + 1, in_feats, hidden), dtype=jnp.float32)
    b1 = 0.01 * jax.random.normal(k_b1, (R + 1, hidden), dtype=jnp.float32)
    # nn.PReLU default single parameter init = 0.25.
    alpha = jnp.full((R + 1,), 0.25, dtype=jnp.float32)
    # Project Linear(hidden*(R+1), out_feats): weight (out, hid*(R+1)) -> stored transposed.
    wp = 0.1 * jax.random.normal(k_wp, (hidden * (R + 1), out_feats), dtype=jnp.float32)
    bp = 0.01 * jax.random.normal(k_bp, (out_feats,), dtype=jnp.float32)

    out = qmodel_forward(feats, w1, b1, alpha, wp, bp)
    out = jax.block_until_ready(out)
    assert out.shape == (N, out_feats)

    # Tight check against a reference run on the same bf16-rounded inputs
    # (the kernel computes in bf16 on the MXU with f32 accumulation), plus a
    # looser check against the pure-f32 reference semantics.
    bf = lambda a: a.astype(jnp.bfloat16).astype(jnp.float32)
    feats_bf = [bf(f) for f in feats]
    ref_bf = reference_forward(feats_bf, bf(w1), b1, alpha, bf(wp), bp)
    assert jnp.allclose(out, ref_bf, atol=2e-2, rtol=2e-2), "mismatch vs bf16 reference"
    ref_f32 = reference_forward(feats, w1, b1, alpha, wp, bp)
    assert jnp.allclose(out, ref_f32, atol=5e-2, rtol=5e-2), "mismatch vs f32 reference"

    # Multi-tile (grid >= 2) + row-padding path smoke check.
    N2 = 300
    feats2_stack = jax.random.normal(k_feat, (R + 1, N2, in_feats), dtype=jnp.float32)
    feats2 = [feats2_stack[r] for r in range(R + 1)]
    out2 = jax.block_until_ready(qmodel_forward(feats2, w1, b1, alpha, wp, bp))
    assert out2.shape == (N2, out_feats)
    ref2 = reference_forward([bf(f) for f in feats2], bf(w1), b1, alpha, bf(wp), bp)
    assert jnp.allclose(out2, ref2, atol=2e-2, rtol=2e-2), "mismatch (multi-tile path)"

    print("KERNEL_OK")
</pallas_src>

<mosaic_0001>
module attributes {stable_mosaic.version = 11 : i64} {
  func.func @kernel(%arg0: i32, %arg1: memref<16x32xf32, #tpu.memory_space<vmem>>, %arg2: memref<16x32xf32, #tpu.memory_space<vmem>>, %arg3: memref<16x32xf32, #tpu.memory_space<vmem>>, %arg4: memref<16x32xf32, #tpu.memory_space<vmem>>, %arg5: memref<4x32x128xbf16, #tpu.memory_space<vmem>>, %arg6: memref<1x128xf32, #tpu.memory_space<vmem>>, %arg7: memref<1x128xf32, #tpu.memory_space<vmem>>, %arg8: memref<8x128xbf16, #tpu.memory_space<vmem>>, %arg9: memref<8x1xf32, #tpu.memory_space<vmem>>, %arg10: memref<8x16xf32, #tpu.memory_space<vmem>>) attributes {dimension_semantics = [#tpu.dimension_semantics<parallel>], iteration_bounds = array<i64: 1>, scalar_prefetch = 0 : i64, scratch_operands = 0 : i64, tpu.core_type = #tpu.core_type<tc>, window_params = [{transform_indices = @transform_0, window_bounds = array<i64: 16, 32>}, {transform_indices = @transform_1, window_bounds = array<i64: 16, 32>}, {transform_indices = @transform_2, window_bounds = array<i64: 16, 32>}, {transform_indices = @transform_3, window_bounds = array<i64: 16, 32>}, {pipeline_mode = #tpu.pipeline_mode<synchronous>, transform_indices = @transform_4, window_bounds = array<i64: 4, 32, 128>}, {pipeline_mode = #tpu.pipeline_mode<synchronous>, transform_indices = @transform_5, window_bounds = array<i64: 1, 128>}, {pipeline_mode = #tpu.pipeline_mode<synchronous>, transform_indices = @transform_6, window_bounds = array<i64: 1, 128>}, {pipeline_mode = #tpu.pipeline_mode<synchronous>, transform_indices = @transform_7, window_bounds = array<i64: 8, 128>}, {pipeline_mode = #tpu.pipeline_mode<synchronous>, transform_indices = @transform_8, window_bounds = array<i64: 8, 1>}, {transform_indices = @transform_9, window_bounds = array<i64: 8, 16>}]} {
    %c0 = arith.constant 0 : index
    %c0_0 = arith.constant 0 : index
    %0 = vector.load %arg1[%c0, %c0_0] : memref<16x32xf32, #tpu.memory_space<vmem>>, vector<16x32xf32>
    %1 = arith.truncf %0 : vector<16x32xf32> to vector<16x32xbf16>
    %c0_1 = arith.constant 0 : index
    %c0_2 = arith.constant 0 : index
    %c0_3 = arith.constant 0 : index
    %2 = vector.load %arg5[%c0_1, %c0_2, %c0_3] : memref<4x32x128xbf16, #tpu.memory_space<vmem>>, vector<1x32x128xbf16>
    %3 = vector.shape_cast %2 : vector<1x32x128xbf16> to vector<32x128xbf16>
    %cst = arith.constant dense<0.000000e+00> : vector<16x128xf32>
    %4 = tpu.matmul %1, %3, %cst {dimension_numbers = #tpu.dot_dimension_numbers<[1], [0], [0], [1], [0, 0, 1, 1], [], []>} : vector<16x32xbf16>, vector<32x128xbf16>, vector<16x128xf32> -> vector<16x128xf32>
    %c0_4 = arith.constant 0 : index
    %c0_5 = arith.constant 0 : index
    %5 = vector.load %arg2[%c0_4, %c0_5] : memref<16x32xf32, #tpu.memory_space<vmem>>, vector<16x32xf32>
    %6 = arith.truncf %5 : vector<16x32xf32> to vector<16x32xbf16>
    %c1 = arith.constant 1 : index
    %c0_6 = arith.constant 0 : index
    %c0_7 = arith.constant 0 : index
    %7 = vector.load %arg5[%c1, %c0_6, %c0_7] : memref<4x32x128xbf16, #tpu.memory_space<vmem>>, vector<1x32x128xbf16>
    %8 = vector.shape_cast %7 : vector<1x32x128xbf16> to vector<32x128xbf16>
    %cst_8 = arith.constant dense<0.000000e+00> : vector<16x128xf32>
    %9 = tpu.matmul %6, %8, %cst_8 {dimension_numbers = #tpu.dot_dimension_numbers<[1], [0], [0], [1], [0, 0, 1, 1], [], []>} : vector<16x32xbf16>, vector<32x128xbf16>, vector<16x128xf32> -> vector<16x128xf32>
    %10 = arith.addf %4, %9 : vector<16x128xf32>
    %c0_9 = arith.constant 0 : index
    %c0_10 = arith.constant 0 : index
    %11 = vector.load %arg3[%c0_9, %c0_10] : memref<16x32xf32, #tpu.memory_space<vmem>>, vector<16x32xf32>
    %12 = arith.truncf %11 : vector<16x32xf32> to vector<16x32xbf16>
    %c2 = arith.constant 2 : index
    %c0_11 = arith.constant 0 : index
    %c0_12 = arith.constant 0 : index
    %13 = vector.load %arg5[%c2, %c0_11, %c0_12] : memref<4x32x128xbf16, #tpu.memory_space<vmem>>, vector<1x32x128xbf16>
    %14 = vector.shape_cast %13 : vector<1x32x128xbf16> to vector<32x128xbf16>
    %cst_13 = arith.constant dense<0.000000e+00> : vector<16x128xf32>
    %15 = tpu.matmul %12, %14, %cst_13 {dimension_numbers = #tpu.dot_dimension_numbers<[1], [0], [0], [1], [0, 0, 1, 1], [], []>} : vector<16x32xbf16>, vector<32x128xbf16>, vector<16x128xf32> -> vector<16x128xf32>
    %16 = arith.addf %10, %15 : vector<16x128xf32>
    %c0_14 = arith.constant 0 : index
    %c0_15 = arith.constant 0 : index
    %17 = vector.load %arg4[%c0_14, %c0_15] : memref<16x32xf32, #tpu.memory_space<vmem>>, vector<16x32xf32>
    %18 = arith.truncf %17 : vector<16x32xf32> to vector<16x32xbf16>
    %c3 = arith.constant 3 : index
    %c0_16 = arith.constant 0 : index
    %c0_17 = arith.constant 0 : index
    %19 = vector.load %arg5[%c3, %c0_16, %c0_17] : memref<4x32x128xbf16, #tpu.memory_space<vmem>>, vector<1x32x128xbf16>
    %20 = vector.shape_cast %19 : vector<1x32x128xbf16> to vector<32x128xbf16>
    %cst_18 = arith.constant dense<0.000000e+00> : vector<16x128xf32>
    %21 = tpu.matmul %18, %20, %cst_18 {dimension_numbers = #tpu.dot_dimension_numbers<[1], [0], [0], [1], [0, 0, 1, 1], [], []>} : vector<16x32xbf16>, vector<32x128xbf16>, vector<16x128xf32> -> vector<16x128xf32>
    %22 = arith.addf %16, %21 : vector<16x128xf32>
    %c0_19 = arith.constant 0 : index
    %c0_20 = arith.constant 0 : index
    %23 = vector.load %arg6[%c0_19, %c0_20] : memref<1x128xf32, #tpu.memory_space<vmem>>, vector<1x128xf32>
    %24 = vector.broadcast %23 : vector<1x128xf32> to vector<16x128xf32>
    %25 = arith.addf %22, %24 : vector<16x128xf32>
    %cst_21 = arith.constant 0.000000e+00 : f32
    %26 = vector.broadcast %cst_21 : f32 to vector<16x128xf32>
    %27 = arith.cmpf oge, %25, %26 : vector<16x128xf32>
    %c0_22 = arith.constant 0 : index
    %c0_23 = arith.constant 0 : index
    %28 = vector.load %arg7[%c0_22, %c0_23] : memref<1x128xf32, #tpu.memory_space<vmem>>, vector<1x128xf32>
    %29 = vector.broadcast %28 : vector<1x128xf32> to vector<16x128xf32>
    %30 = arith.mulf %29, %25 : vector<16x128xf32>
    %31 = arith.select %27, %25, %30 : vector<16x128xi1>, vector<16x128xf32>
    %c0_24 = arith.constant 0 : index
    %c0_25 = arith.constant 0 : index
    %32 = vector.load %arg8[%c0_24, %c0_25] : memref<8x128xbf16, #tpu.memory_space<vmem>>, vector<8x128xbf16>
    %33 = arith.truncf %31 : vector<16x128xf32> to vector<16x128xbf16>
    %cst_26 = arith.constant dense<0.000000e+00> : vector<8x16xf32>
    %34 = tpu.matmul %32, %33, %cst_26 {dimension_numbers = #tpu.dot_dimension_numbers<[1], [1], [0], [0], [0, 0, 1, 0], [], []>} : vector<8x128xbf16>, vector<16x128xbf16>, vector<8x16xf32> -> vector<8x16xf32>
    %c0_27 = arith.constant 0 : index
    %c0_28 = arith.constant 0 : index
    %35 = vector.load %arg9[%c0_27, %c0_28] : memref<8x1xf32, #tpu.memory_space<vmem>>, vector<8x1xf32>
    %36 = vector.broadcast %35 : vector<8x1xf32> to vector<8x16xf32>
    %37 = arith.addf %34, %36 : vector<8x16xf32>
    %c0_29 = arith.constant 0 : index
    %c0_30 = arith.constant 0 : index
    %38 = vector.load %arg10[%c0_29, %c0_30] : memref<8x16xf32, #tpu.memory_space<vmem>>, vector<8x16xf32>
    tpu.vector_store %arg10[%c0_29, %c0_30], %37 {strides = array<i32>} : memref<8x16xf32, #tpu.memory_space<vmem>>, vector<8x16xf32>,
    return
  }
  func.func @transform_0(%arg0: i32) -> (i32, i32) {
    %c0_i32 = arith.constant 0 : i32
    %c0_i32_0 = arith.constant 0 : i32
    return %arg0, %c0_i32 : i32, i32
  }
  func.func @transform_1(%arg0: i32) -> (i32, i32) {
    %c0_i32 = arith.constant 0 : i32
    %c0_i32_0 = arith.constant 0 : i32
    return %arg0, %c0_i32 : i32, i32
  }
  func.func @transform_2(%arg0: i32) -> (i32, i32) {
    %c0_i32 = arith.constant 0 : i32
    %c0_i32_0 = arith.constant 0 : i32
    return %arg0, %c0_i32 : i32, i32
  }
  func.func @transform_3(%arg0: i32) -> (i32, i32) {
    %c0_i32 = arith.constant 0 : i32
    %c0_i32_0 = arith.constant 0 : i32
    return %arg0, %c0_i32 : i32, i32
  }
  func.func @transform_4(%arg0: i32) -> (i32, i32, i32) {
    %c0_i32 = arith.constant 0 : i32
    %c0_i32_0 = arith.constant 0 : i32
    %c0_i32_1 = arith.constant 0 : i32
    %c0_i32_2 = arith.constant 0 : i32
    return %c0_i32, %c0_i32_0, %c0_i32_1 : i32, i32, i32
  }
  func.func @transform_5(%arg0: i32) -> (i32, i32) {
    %c0_i32 = arith.constant 0 : i32
    %c0_i32_0 = arith.constant 0 : i32
    %c0_i32_1 = arith.constant 0 : i32
    return %c0_i32, %c0_i32_0 : i32, i32
  }
  func.func @transform_6(%arg0: i32) -> (i32, i32) {
    %c0_i32 = arith.constant 0 : i32
    %c0_i32_0 = arith.constant 0 : i32
    %c0_i32_1 = arith.constant 0 : i32
    return %c0_i32, %c0_i32_0 : i32, i32
  }
  func.func @transform_7(%arg0: i32) -> (i32, i32) {
    %c0_i32 = arith.constant 0 : i32
    %c0_i32_0 = arith.constant 0 : i32
    %c0_i32_1 = arith.constant 0 : i32
    return %c0_i32, %c0_i32_0 : i32, i32
  }
  func.func @transform_8(%arg0: i32) -> (i32, i32) {
    %c0_i32 = arith.constant 0 : i32
    %c0_i32_0 = arith.constant 0 : i32
    %c0_i32_1 = arith.constant 0 : i32
    return %c0_i32, %c0_i32_0 : i32, i32
  }
  func.func @transform_9(%arg0: i32) -> (i32, i32) {
    %c0_i32 = arith.constant 0 : i32
    %c0_i32_0 = arith.constant 0 : i32
    return %c0_i32, %arg0 : i32, i32
  }
}

</mosaic_0001>

<llo_original>
// kernel: tpu_custom_call.1
$region0: #{tpu_custom_call.1}
  #allocation0 [shape = 'u32[]', space=smem, size = 0x4, offset = 0x4, fixed_abs, tag = 'smem constant byte address 0x4 - core index']
  #allocation1 [shape = 'u32[144,128]{1,0:T(1,128)}', space=vmem, size = 0x12000, scoped, tag = 'internal scratch']
  %s0 = inlined_call_operand.hbm [shape: f32[16,32], index: 0, kind: input, shape index: {}]
  %s1 = inlined_call_operand.hbm [shape: f32[16,32], index: 1, kind: input, shape index: {}]
  %s2 = inlined_call_operand.vmem [shape: f32[16,32], index: 2, kind: input, shape index: {}]
  %s3 = inlined_call_operand.hbm [shape: f32[16,32], index: 3, kind: input, shape index: {}]
  %s4 = inlined_call_operand.hbm [shape: bf16[4,32,128], index: 4, kind: input, shape index: {}]
  %s5 = inlined_call_operand.vmem [shape: f32[1,128], index: 5, kind: input, shape index: {}]
  %s6 = inlined_call_operand.vmem [shape: f32[1,128], index: 6, kind: input, shape index: {}]
  %s7 = inlined_call_operand.vmem [shape: bf16[8,128], index: 7, kind: input, shape index: {}]
  %s8 = inlined_call_operand.vmem [shape: f32[8,1], index: 8, kind: input, shape index: {}]
  %s9 = inlined_call_operand.hbm [shape: f32[8,16], index: 9, kind: output, shape index: {}]
  %s10 = sld [smem:[#allocation0]]
  $region62: #{tpu_custom_call.1} parent=0
    _
  %s12 = ssub.s32 1, %s10
  %s13 = scalar_select 0, %s12, %s10
  $region1: #{tpu_custom_call.1} parent=0
    #allocation2 [shape = 'u8[8192]{0}', space=vmem, size = 0x2000, scoped, tag = 'input window, operand 0, single buffered']
    #allocation3 [shape = 's32[1]{0}', space=sflag, size = 0x4, scoped, tag = 'scoped memory for tpu_custom_call.1']
    #allocation4 [shape = 's32[1]{0}', space=sflag, size = 0x4, scoped, tag = 'scoped memory for tpu_custom_call.1']
    #allocation5 [shape = 'u8[8192]{0}', space=vmem, size = 0x2000, scoped, tag = 'input window, operand 1, single buffered']
    #allocation6 [shape = 's32[1]{0}', space=sflag, size = 0x4, scoped, tag = 'scoped memory for tpu_custom_call.1']
    #allocation7 [shape = 'u8[8192]{0}', space=vmem, size = 0x2000, scoped, tag = 'input window, operand 3, single buffered']
    #allocation8 [shape = 'u8[32768]{0}', space=vmem, size = 0x8000, scoped, tag = 'input window, operand 4, single buffered']
    #allocation9 [shape = 's32[1]{0}', space=sflag, size = 0x4, scoped, tag = 'scoped memory for tpu_custom_call.1']
    #allocation10 [shape = 'u8[4096]{0}', space=vmem, size = 0x1000, scoped, tag = 'output window, operand 0, single buffered']
    %14 = vsyncpa [#allocation3], 0
    %15 = vsyncpa [#allocation6], 0
    %16 = vsyncpa [#allocation9], 0
    %17 = vsyncpa [#allocation4], 0
    // Predicated region
    $region2: #{tpu_custom_call.1} parent=1 // pred_check
      _
    $region3: #{tpu_custom_call.1} parent=1 // pred_check_branch
      %19 = sbr.rel (0) target = $region5
    $region4: #{tpu_custom_call.1} parent=1 // pred_region
      %s21 = ssub.s32 256, 256
      %22 = vsyncadd [#allocation3], %s21
      %s23 = sshll.u32 [#allocation2], 4
      %s24 = int_to_ptr.vmem [resolvable:$true] %s23
      %29 = dma.hbm_to_vmem [thread:$0]  %s0, 256, %s24, [#allocation3], 128, 128, 8
    $region5: #{tpu_custom_call.1} parent=1 // pred_fallthru
      _
    // Predicated region
    $region6: #{tpu_custom_call.1} parent=1 // pred_check
      _
    $region7: #{tpu_custom_call.1} parent=1 // pred_check_branch
      %31 = sbr.rel (0) target = $region9
    $region8: #{tpu_custom_call.1} parent=1 // pred_region
      %s33 = ssub.s32 256, 256
      %34 = vsyncadd [#allocation6], %s33
      %s35 = sshll.u32 [#allocation5], 4
      %s36 = int_to_ptr.vmem [resolvable:$true] %s35
      %41 = dma.hbm_to_vmem [thread:$0]  %s1, 256, %s36, [#allocation6], 128, 128, 8
    $region9: #{tpu_custom_call.1} parent=1 // pred_fallthru
      _
    // Predicated region
    $region10: #{tpu_custom_call.1} parent=1 // pred_check
      _
    $region11: #{tpu_custom_call.1} parent=1 // pred_check_branch
      %43 = sbr.rel (0) target = $region13
    $region12: #{tpu_custom_call.1} parent=1 // pred_region
      _
    $region13: #{tpu_custom_call.1} parent=1 // pred_fallthru
      _
    // Predicated region
    $region14: #{tpu_custom_call.1} parent=1 // pred_check
      _
    $region15: #{tpu_custom_call.1} parent=1 // pred_check_branch
      %45 = sbr.rel (0) target = $region17
    $region16: #{tpu_custom_call.1} parent=1 // pred_region
      %s47 = ssub.s32 256, 256
      %48 = vsyncadd [#allocation6], %s47
      %s49 = sshll.u32 [#allocation7], 4
      %s50 = int_to_ptr.vmem [resolvable:$true] %s49
      %55 = dma.hbm_to_vmem [thread:$0]  %s3, 256, %s50, [#allocation6], 128, 128, 8
    $region17: #{tpu_custom_call.1} parent=1 // pred_fallthru
      _
    // Predicated region
    $region18: #{tpu_custom_call.1} parent=1 // pred_check
      _
    $region19: #{tpu_custom_call.1} parent=1 // pred_check_branch
      %57 = sbr.rel (0) target = $region21
    $region20: #{tpu_custom_call.1} parent=1 // pred_region
      %s59 = ssub.s32 1024, 1024
      %60 = vsyncadd [#allocation9], %s59
      %s61 = sshll.u32 [#allocation8], 4
      %s62 = int_to_ptr.vmem [resolvable:$true] %s61
      %67 = dma.hbm_to_vmem [thread:$0]  %s4, 1024, %s62, [#allocation9], 64, 64, 4
    $region21: #{tpu_custom_call.1} parent=1 // pred_fallthru
      _
    // Predicated region
    $region22: #{tpu_custom_call.1} parent=1 // pred_check
      _
    $region23: #{tpu_custom_call.1} parent=1 // pred_check_branch
      %69 = sbr.rel (0) target = $region25
    $region24: #{tpu_custom_call.1} parent=1 // pred_region
      _
    $region25: #{tpu_custom_call.1} parent=1 // pred_fallthru
      _
    // Predicated region
    $region26: #{tpu_custom_call.1} parent=1 // pred_check
      _
    $region27: #{tpu_custom_call.1} parent=1 // pred_check_branch
      %71 = sbr.rel (0) target = $region29
    $region28: #{tpu_custom_call.1} parent=1 // pred_region
      _
    $region29: #{tpu_custom_call.1} parent=1 // pred_fallthru
      _
    // Predicated region
    $region30: #{tpu_custom_call.1} parent=1 // pred_check
      _
    $region31: #{tpu_custom_call.1} parent=1 // pred_check_branch
      %73 = sbr.rel (0) target = $region33
    $region32: #{tpu_custom_call.1} parent=1 // pred_region
      _
    $region33: #{tpu_custom_call.1} parent=1 // pred_fallthru
      _
    // Predicated region
    $region34: #{tpu_custom_call.1} parent=1 // pred_check
      _
    $region35: #{tpu_custom_call.1} parent=1 // pred_check_branch
      %75 = sbr.rel (0) target = $region37
    $region36: #{tpu_custom_call.1} parent=1 // pred_region
      _
    $region37: #{tpu_custom_call.1} parent=1 // pred_fallthru
      _
    // Predicated region
    $region38: #{tpu_custom_call.1} parent=1 // pred_check
      _
    $region39: #{tpu_custom_call.1} parent=1 // pred_check_branch
      %77 = sbr.rel (0) target = $region41
    $region40: #{tpu_custom_call.1} parent=1 // pred_region
      %78 = dma.done [#allocation3], 256
    $region41: #{tpu_custom_call.1} parent=1 // pred_fallthru
      _
    // Predicated region
    $region42: #{tpu_custom_call.1} parent=1 // pred_check
      _
    $region43: #{tpu_custom_call.1} parent=1 // pred_check_branch
      %80 = sbr.rel (0) target = $region45
    $region44: #{tpu_custom_call.1} parent=1 // pred_region
      %81 = dma.done [#allocation6], 256
    $region45: #{tpu_custom_call.1} parent=1 // pred_fallthru
      _
    // Predicated region
    $region46: #{tpu_custom_call.1} parent=1 // pred_check
      _
    $region47: #{tpu_custom_call.1} parent=1 // pred_check_branch
      %83 = sbr.rel (0) target = $region49
    $region48: #{tpu_custom_call.1} parent=1 // pred_region
      %84 = dma.done [#allocation6], 256
    $region49: #{tpu_custom_call.1} parent=1 // pred_fallthru
      _
    // Predicated region
    $region50: #{tpu_custom_call.1} parent=1 // pred_check
      _
    $region51: #{tpu_custom_call.1} parent=1 // pred_check_branch
      %86 = sbr.rel (0) target = $region53
    $region52: #{tpu_custom_call.1} parent=1 // pred_region
      %87 = dma.done [#allocation9], 1024
    $region53: #{tpu_custom_call.1} parent=1 // pred_fallthru
      _
    %v89 = vld [vmem:[#allocation2] sm:$0xff]
    %v90 = vld [vmem:[#allocation2 + $0x8] sm:$0xff]
    %v91 = vpack.c.bf16 %v90, %v89
    %v92 = vld [vmem:[#allocation8] sm:$0xf]
    %v93 = vld [vmem:[#allocation8 + $0x4] sm:$0xf]
    %v94 = vld [vmem:[#allocation8 + $0x8] sm:$0xf]
    %v95 = vld [vmem:[#allocation8 + $0xc] sm:$0xf]
    %v96 = vld [vmem:[#allocation5] sm:$0xff]
    %v97 = vld [vmem:[#allocation5 + $0x8] sm:$0xff]
    %v98 = vpack.c.bf16 %v97, %v96
    %s99 = scalar_lea.vmem [#allocation8], 16
    %v100 = vld [vmem:[%s99] sm:$0xf]
    %v101 = vld [vmem:[%s99 + $0x4] sm:$0xf]
    %v102 = vld [vmem:[%s99 + $0x8] sm:$0xf]
    %v103 = vld [vmem:[%s99 + $0xc] sm:$0xf]
    %v108 = vunpack.c.l.b16 %v100
    %v109 = vunpack.c.l.b16 %v101
    %v110 = vunpack.c.l.b16 %v102
    %v111 = vunpack.c.l.b16 %v103
    %v112 = vpack.c.b16 %v109, %v108
    %v113 = vpack.c.b16 %v111, %v110
    %vm116 = vcmask 261120
    %v118 = vsel %vm116, %v98, 0
    %120 = vmatprep.subr.bf16.mxu0 0
    %121 = vmatpush1.bf16.msra.mxu0 %v112
    %122 = vmatprep.subr.bf16.mxu0 0
    %123 = vmatpush1.bf16.msra.mxu0 %v113
    %124 = vmatprep.subr.bf16.mxu0 0
    %125 = vmatpush1.bf16.msra.mxu0 0
    %126 = vmatprep.subr.bf16.mxu0 0
    %127 = vmatpush1.bf16.msra.mxu0 0
    %128 = vmatprep.subr.bf16.mxu0 0
    %129 = vmatpush1.bf16.msra.mxu0 0
    %130 = vmatprep.subr.bf16.mxu0 0
    %131 = vmatpush1.bf16.msra.mxu0 0
    %132 = vmatprep.subr.bf16.mxu0 0
    %133 = vmatpush1.bf16.msra.mxu0 0
    %134 = vmatprep.subr.bf16.mxu0 0
    %135 = vmatpush1.bf16.msra.mxu0 0
    %136 = vmatprep.subr.bf16.mxu0 0
    %137 = vmatpush1.bf16.msra.mxu0 0
    %138 = vmatprep.subr.bf16.mxu0 0
    %139 = vmatpush1.bf16.msra.mxu0 0
    %140 = vmatprep.subr.bf16.mxu0 0
    %141 = vmatpush1.bf16.msra.mxu0 0
    %142 = vmatprep.subr.bf16.mxu0 0
    %143 = vmatpush1.bf16.msra.mxu0 0
    %144 = vmatprep.subr.bf16.mxu0 0
    %145 = vmatpush1.bf16.msra.mxu0 0
    %146 = vmatprep.subr.bf16.mxu0 0
    %147 = vmatpush1.bf16.msra.mxu0 0
    %148 = vmatprep.subr.bf16.mxu0 0
    %149 = vmatpush1.bf16.msra.mxu0 0
    %150 = vmatprep.subr.bf16.mxu0 0
    %151 = vmatpush1.bf16.msra.mxu0 0
    %152 = vmatprep.mubr.bf16.mxu0 0
    %153 = vmatmul.mubr.bf16.gmra.mrb[0].mxu0 %v118
    %v154 = vpop.f32.mrb[0].mxu0
    %v155 = vadd.f32 0.0, %v154
    %v156 = vpop.f32.mrb[0].mxu0
    %v157 = vpop.f32.mrb[0].mxu0
    %v158 = vadd.f32 0.0, %v157
    %v159 = vpop.f32.mrb[0].mxu0
    %160 = vdwg.mxu0
    %v165 = vunpack.c.l.b16 %v92
    %v166 = vunpack.c.l.b16 %v93
    %v167 = vunpack.c.l.b16 %v94
    %v168 = vunpack.c.l.b16 %v95
    %v169 = vpack.c.b16 %v166, %v165
    %v170 = vpack.c.b16 %v168, %v167
    %v174 = vsel %vm116, %v91, 0
    %176 = vmatprep.subr.bf16.mxu0 0
    %177 = vmatpush1.bf16.msra.mxu0 %v169
    %178 = vmatprep.subr.bf16.mxu0 0
    %179 = vmatpush1.bf16.msra.mxu0 %v170
    %180 = vmatprep.subr.bf16.mxu0 0
    %181 = vmatpush1.bf16.msra.mxu0 0
    %182 = vmatprep.subr.bf16.mxu0 0
    %183 = vmatpush1.bf16.msra.mxu0 0
    %184 = vmatprep.subr.bf16.mxu0 0
    %185 = vmatpush1.bf16.msra.mxu0 0
    %186 = vmatprep.subr.bf16.mxu0 0
    %187 = vmatpush1.bf16.msra.mxu0 0
    %188 = vmatprep.subr.bf16.mxu0 0
    %189 = vmatpush1.bf16.msra.mxu0 0
    %190 = vmatprep.subr.bf16.mxu0 0
    %191 = vmatpush1.bf16.msra.mxu0 0
    %192 = vmatprep.subr.bf16.mxu0 0
    %193 = vmatpush1.bf16.msra.mxu0 0
    %194 = vmatprep.subr.bf16.mxu0 0
    %195 = vmatpush1.bf16.msra.mxu0 0
    %196 = vmatprep.subr.bf16.mxu0 0
    %197 = vmatpush1.bf16.msra.mxu0 0
    %198 = vmatprep.subr.bf16.mxu0 0
    %199 = vmatpush1.bf16.msra.mxu0 0
    %200 = vmatprep.subr.bf16.mxu0 0
    %201 = vmatpush1.bf16.msra.mxu0 0
    %202 = vmatprep.subr.bf16.mxu0 0
    %203 = vmatpush1.bf16.msra.mxu0 0
    %204 = vmatprep.subr.bf16.mxu0 0
    %205 = vmatpush1.bf16.msra.mxu0 0
    %206 = vmatprep.subr.bf16.mxu0 0
    %207 = vmatpush1.bf16.msra.mxu0 0
    %208 = vmatprep.mubr.bf16.mxu0 0
    %209 = vmatmul.mubr.bf16.gmra.mrb[0].mxu0 %v174
    %v210 = vpop.f32.mrb[0].mxu0
    %v211 = vadd.f32 %v155, %v210
    %v212 = vpop.f32.mrb[0].mxu0
    %v213 = vpop.f32.mrb[0].mxu0
    %v214 = vadd.f32 %v158, %v213
    %v215 = vpop.f32.mrb[0].mxu0
    %216 = vdwg.mxu0
    %v217 = vld [vmem:[%s2] sm:$0xff]
    %v218 = vld [vmem:[%s2 + $0x8] sm:$0xff]
    %v219 = vpack.c.bf16 %v218, %v217
    %s220 = scalar_lea.vmem [#allocation8], 32
    %v221 = vld [vmem:[%s220] sm:$0xf]
    %v222 = vld [vmem:[%s220 + $0x4] sm:$0xf]
    %v223 = vld [vmem:[%s220 + $0x8] sm:$0xf]
    %v224 = vld [vmem:[%s220 + $0xc] sm:$0xf]
    %v229 = vunpack.c.l.b16 %v221
    %v230 = vunpack.c.l.b16 %v222
    %v231 = vunpack.c.l.b16 %v223
    %v232 = vunpack.c.l.b16 %v224
    %v233 = vpack.c.b16 %v230, %v229
    %v234 = vpack.c.b16 %v232, %v231
    %v238 = vsel %vm116, %v219, 0
    %240 = vmatprep.subr.bf16.mxu0 0
    %241 = vmatpush1.bf16.msra.mxu0 %v233
    %242 = vmatprep.subr.bf16.mxu0 0
    %243 = vmatpush1.bf16.msra.mxu0 %v234
    %244 = vmatprep.subr.bf16.mxu0 0
    %245 = vmatpush1.bf16.msra.mxu0 0
    %246 = vmatprep.subr.bf16.mxu0 0
    %247 = vmatpush1.bf16.msra.mxu0 0
    %248 = vmatprep.subr.bf16.mxu0 0
    %249 = vmatpush1.bf16.msra.mxu0 0
    %250 = vmatprep.subr.bf16.mxu0 0
    %251 = vmatpush1.bf16.msra.mxu0 0
    %252 = vmatprep.subr.bf16.mxu0 0
    %253 = vmatpush1.bf16.msra.mxu0 0
    %254 = vmatprep.subr.bf16.mxu0 0
    %255 = vmatpush1.bf16.msra.mxu0 0
    %256 = vmatprep.subr.bf16.mxu0 0
    %257 = vmatpush1.bf16.msra.mxu0 0
    %258 = vmatprep.subr.bf16.mxu0 0
    %259 = vmatpush1.bf16.msra.mxu0 0
    %260 = vmatprep.subr.bf16.mxu0 0
    %261 = vmatpush1.bf16.msra.mxu0 0
    %262 = vmatprep.subr.bf16.mxu0 0
    %263 = vmatpush1.bf16.msra.mxu0 0
    %264 = vmatprep.subr.bf16.mxu0 0
    %265 = vmatpush1.bf16.msra.mxu0 0
    %266 = vmatprep.subr.bf16.mxu0 0
    %267 = vmatpush1.bf16.msra.mxu0 0
    %268 = vmatprep.subr.bf16.mxu0 0
    %269 = vmatpush1.bf16.msra.mxu0 0
    %270 = vmatprep.subr.bf16.mxu0 0
    %271 = vmatpush1.bf16.msra.mxu0 0
    %272 = vmatprep.mubr.bf16.mxu0 0
    %273 = vmatmul.mubr.bf16.gmra.mrb[0].mxu0 %v238
    %v274 = vpop.f32.mrb[0].mxu0
    %v275 = vadd.f32 0.0, %v274
    %v276 = vpop.f32.mrb[0].mxu0
    %v277 = vpop.f32.mrb[0].mxu0
    %v278 = vadd.f32 0.0, %v277
    %v279 = vpop.f32.mrb[0].mxu0
    %280 = vdwg.mxu0
    %v281 = vadd.f32 %v211, %v275
    %v282 = vadd.f32 %v214, %v278
    %v283 = vld [vmem:[#allocation7] sm:$0xff]
    %v284 = vld [vmem:[#allocation7 + $0x8] sm:$0xff]
    %v285 = vpack.c.bf16 %v284, %v283
    %s286 = scalar_lea.vmem [#allocation8], 48
    %v287 = vld [vmem:[%s286] sm:$0xf]
    %v288 = vld [vmem:[%s286 + $0x4] sm:$0xf]
    %v289 = vld [vmem:[%s286 + $0x8] sm:$0xf]
    %v290 = vld [vmem:[%s286 + $0xc] sm:$0xf]
    %v295 = vunpack.c.l.b16 %v287
    %v296 = vunpack.c.l.b16 %v288
    %v297 = vunpack.c.l.b16 %v289
    %v298 = vunpack.c.l.b16 %v290
    %v299 = vpack.c.b16 %v296, %v295
    %v300 = vpack.c.b16 %v298, %v297
    %v304 = vsel %vm116, %v285, 0
    %306 = vmatprep.subr.bf16.mxu0 0
    %307 = vmatpush1.bf16.msra.mxu0 %v299
    %308 = vmatprep.subr.bf16.mxu0 0
    %309 = vmatpush1.bf16.msra.mxu0 %v300
    %310 = vmatprep.subr.bf16.mxu0 0
    %311 = vmatpush1.bf16.msra.mxu0 0
    %312 = vmatprep.subr.bf16.mxu0 0
    %313 = vmatpush1.bf16.msra.mxu0 0
    %314 = vmatprep.subr.bf16.mxu0 0
    %315 = vmatpush1.bf16.msra.mxu0 0
    %316 = vmatprep.subr.bf16.mxu0 0
    %317 = vmatpush1.bf16.msra.mxu0 0
    %318 = vmatprep.subr.bf16.mxu0 0
    %319 = vmatpush1.bf16.msra.mxu0 0
    %320 = vmatprep.subr.bf16.mxu0 0
    %321 = vmatpush1.bf16.msra.mxu0 0
    %322 = vmatprep.subr.bf16.mxu0 0
    %323 = vmatpush1.bf16.msra.mxu0 0
    %324 = vmatprep.subr.bf16.mxu0 0
    %325 = vmatpush1.bf16.msra.mxu0 0
    %326 = vmatprep.subr.bf16.mxu0 0
    %327 = vmatpush1.bf16.msra.mxu0 0
    %328 = vmatprep.subr.bf16.mxu0 0
    %329 = vmatpush1.bf16.msra.mxu0 0
    %330 = vmatprep.subr.bf16.mxu0 0
    %331 = vmatpush1.bf16.msra.mxu0 0
    %332 = vmatprep.subr.bf16.mxu0 0
    %333 = vmatpush1.bf16.msra.mxu0 0
    %334 = vmatprep.subr.bf16.mxu0 0
    %335 = vmatpush1.bf16.msra.mxu0 0
    %336 = vmatprep.subr.bf16.mxu0 0
    %337 = vmatpush1.bf16.msra.mxu0 0
    %338 = vmatprep.mubr.bf16.mxu0 0
    %339 = vmatmul.mubr.bf16.gmra.mrb[0].mxu0 %v304
    %v340 = vpop.f32.mrb[0].mxu0
    %v341 = vadd.f32 0.0, %v340
    %v342 = vpop.f32.mrb[0].mxu0
    %v343 = vpop.f32.mrb[0].mxu0
    %v344 = vadd.f32 0.0, %v343
    %v345 = vpop.f32.mrb[0].mxu0
    %346 = vdwg.mxu0
    %v347 = vadd.f32 %v281, %v341
    %v348 = vadd.f32 %v282, %v344
    %v349 = vld [vmem:[%s5] sm:$0x1]
    %v351 = vlaneseq
    %v352 = vshrl.u32 %v351, 7
    %v353 = vsub.s32 0, %v352
    %v354 = vrot.slane %v349, %v353
    %v356 = vadd.f32 %v347, %v354
    %v357 = vadd.f32 %v348, %v354
    %vm358 = vcmp.ge.f32.partialorder %v356, 0.0
    %vm359 = vcmp.ge.f32.partialorder %v357, 0.0
    %v360 = vld [vmem:[%s6] sm:$0x1]
    %v362 = vlaneseq
    %v363 = vshrl.u32 %v362, 7
    %v364 = vsub.s32 0, %v363
    %v365 = vrot.slane %v360, %v364
    %v367 = vmul.f32 %v365, %v356
    %v368 = vmul.f32 %v365, %v357
    %v369 = vsel %vm358, %v356, %v367
    %v370 = vsel %vm359, %v357, %v368
    %v371 = vld [vmem:[%s7] sm:$0xf]
    %v372 = vpack.c.bf16 %v370, %v369
    %v373 = vld [vmem:[%s8] sm:$0xff]
    %375 = vset.pattern.permute.xlu0 0
    %376 = vperm.xlu0 %375, %v373
    %v377 = vpop.permute.xlu0 %376
    %379 = vmatprep.subr.bf16.mxu0 0
    %380 = vmatpush1.bf16.xpose.msra.mxu0 %v372
    %381 = vmatprep.subr.bf16.mxu0 0
    %382 = vmatpush1.bf16.xpose.msra.mxu0 0
    %383 = vmatprep.subr.bf16.mxu0 0
    %384 = vmatpush1.bf16.xpose.msra.mxu0 0
    %385 = vmatprep.subr.bf16.mxu0 0
    %386 = vmatpush1.bf16.xpose.msra.mxu0 0
    %387 = vmatprep.subr.bf16.mxu0 0
    %388 = vmatpush1.bf16.xpose.msra.mxu0 0
    %389 = vmatprep.subr.bf16.mxu0 0
    %390 = vmatpush1.bf16.xpose.msra.mxu0 0
    %391 = vmatprep.subr.bf16.mxu0 0
    %392 = vmatpush1.bf16.xpose.msra.mxu0 0
    %393 = vmatprep.subr.bf16.mxu0 0
    %394 = vmatpush1.bf16.xpose.msra.mxu0 0
    %395 = vmatprep.subr.bf16.mxu0 0
    %396 = vmatpush1.bf16.xpose.msra.mxu0 0
    %397 = vmatprep.subr.bf16.mxu0 0
    %398 = vmatpush1.bf16.xpose.msra.mxu0 0
    %399 = vmatprep.subr.bf16.mxu0 0
    %400 = vmatpush1.bf16.xpose.msra.mxu0 0
    %401 = vmatprep.subr.bf16.mxu0 0
    %402 = vmatpush1.bf16.xpose.msra.mxu0 0
    %403 = vmatprep.subr.bf16.mxu0 0
    %404 = vmatpush1.bf16.xpose.msra.mxu0 0
    %405 = vmatprep.subr.bf16.mxu0 0
    %406 = vmatpush1.bf16.xpose.msra.mxu0 0
    %407 = vmatprep.subr.bf16.mxu0 0
    %408 = vmatpush1.bf16.xpose.msra.mxu0 0
    %409 = vmatprep.subr.bf16.mxu0 0
    %410 = vmatpush1.bf16.xpose.msra.mxu0 0
    %411 = vmatprep.mubr.bf16.mxu0 0
    %412 = vmatmul.mubr.bf16.gmra.mrb[0].mxu0 %v371
    %v413 = vpop.f32.mrb[0].mxu0
    %v414 = vadd.f32 %v377, %v413
    %v415 = vpop.f32.mrb[0].mxu0
    %v416 = vpop.f32.mrb[0].mxu0
    %v417 = vpop.f32.mrb[0].mxu0
    %418 = vdwg.mxu0
    %vm419 = vcmask 130048
    %420 = vst.msk [vmem:[#allocation10] sm:$0xff] %vm419, %v414
    // Predicated region
    $region54: #{tpu_custom_call.1} parent=1 // pred_check
      _
    $region55: #{tpu_custom_call.1} parent=1 // pred_check_branch
      %422 = sbr.rel (0) target = $region57
    $region56: #{tpu_custom_call.1} parent=1 // pred_region
      %s424 = ssub.s32 128, 128
      %425 = vsyncadd [#allocation4], %s424
      %s427 = sshll.u32 [#allocation10], 4
      %s428 = int_to_ptr.vmem [resolvable:$true] %s427
      %430 = dma.vmem_to_hbm [thread:$0]  %s428, 128, %s9, [#allocation4]
    $region57: #{tpu_custom_call.1} parent=1 // pred_fallthru
      _
    // Predicated region
    $region58: #{tpu_custom_call.1} parent=1 // pred_check
      _
    $region59: #{tpu_custom_call.1} parent=1 // pred_check_branch
      %432 = sbr.rel (0) target = $region61
    $region60: #{tpu_custom_call.1} parent=1 // pred_region
      %433 = dma.done [#allocation4], 128
    $region61: #{tpu_custom_call.1} parent=1 // pred_fallthru
      _
    %434 = vsyncpa [#allocation3], 1
    %435 = vsyncpa [#allocation6], 1
    %436 = vsyncpa [#allocation9], 1
    %437 = vsyncpa [#allocation4], 1

</llo_original>
